<compile_context>
chip_gen: v5e
topology: v5e:2x2
jax: 0.10.0
libtpu: 0.0.40
codegen_flags: <defaults>
</compile_context>

<pallas_src>
import functools

import jax
import jax.numpy as jnp
from jax.experimental import pallas as pl
from jax.experimental.pallas import tpu as pltpu


_LANE = 128     # lane width (last dim of a vreg)
_SUBLANE = 8    # f32 sublane width (second-to-last dim)


def _round_up(x: int, m: int) -> int:
    return ((x + m - 1) // m) * m


def _pad_dim(d: int) -> int:
    # <=128 -> 128 (minimum lane-dense width); >128 -> multiple of 256 so the
    # 256x256 MXU on v6e/v7x is fully occupied per push.
    return _LANE if d <= _LANE else _round_up(d, 2 * _LANE)


def _mlp_fused_kernel(*refs, n_layers, dims_pad, compute_dtype):
    """Fused Linear->ReLU chain over one batch tile.

    refs = (x, w0, b0, ..., w_{L-1}, b_{L-1}, out, buf0, buf1)
      x:    (tm, dims_pad[0])                     padded input tile
      w_i:  (dims_pad[i], dims_pad[i+1])          pre-transposed, zero-padded, compute_dtype
      b_i:  (1, dims_pad[i+1])                    zero-padded, f32
      out:  (tm, dims_pad[-1])
      buf*: (tm, max(dims_pad)) compute_dtype VMEM ping-pong activation scratch
    Each hidden layer writes exactly the column range [0, dims_pad[i+1]) of a
    buffer and the next layer reads exactly that range, so uninitialized scratch
    is never observed.
    """
    x_ref = refs[0]
    param_refs = refs[1:1 + 2 * n_layers]
    o_ref = refs[1 + 2 * n_layers]
    bufs = refs[2 + 2 * n_layers:]

    # Layer 0 reads the input block directly -- no staging store+reload.
    x = x_ref[...].astype(compute_dtype)

    for i in range(n_layers):
        w_ref = param_refs[2 * i]
        b_ref = param_refs[2 * i + 1]
        d_out = dims_pad[i + 1]

        # MXU matmul with f32 accumulation; bias (+ReLU) epilogue stays f32.
        y = jnp.dot(x, w_ref[...], preferred_element_type=jnp.float32)
        y = y + b_ref[...]

        if i < n_layers - 1:
            y = jnp.maximum(y, 0.0)                      # ReLU between hidden layers
            buf = bufs[i % 2]
            buf[:, pl.ds(0, d_out)] = y.astype(buf.dtype)
            x = buf[:, pl.ds(0, d_out)]                  # already compute_dtype
        else:
            o_ref[...] = y.astype(o_ref.dtype)           # no activation on the last layer


def init_mlp_params(n_units, key):
    """Deterministic parameter init matching nn.Linear shapes:
    weight (dim_out, dim_in), bias (dim_out,)."""
    params = []
    for dim_in, dim_out in zip(n_units[:-1], n_units[1:]):
        key, kw, kb = jax.random.split(key, 3)
        bound = 1.0 / jnp.sqrt(dim_in)
        w = jax.random.uniform(kw, (dim_out, dim_in), jnp.float32, -bound, bound)
        b = jax.random.uniform(kb, (dim_out,), jnp.float32, -bound, bound)
        params.append((w, b))
    return params


def count_parameters(params):
    return sum(int(w.size) + int(b.size) for w, b in params)


def prepare_mlp_params(params, compute_dtype=jnp.float32):
    """One-time prep (outside the hot path): transpose each nn.Linear weight to
    (D_in, D_out), zero-pad feature dims, and pre-cast weights to compute_dtype
    (bf16 recommended on v6e/v7x). Biases stay f32 (f32 epilogue on all gens)."""
    dims = [int(params[0][0].shape[1])] + [int(w.shape[0]) for w, _ in params]
    dims_pad = tuple(_pad_dim(d) for d in dims)

    prepared = []
    for i, (w, b) in enumerate(params):
        d_out, d_in = w.shape
        d_in_p, d_out_p = dims_pad[i], dims_pad[i + 1]
        w_t = jnp.zeros((d_in_p, d_out_p), jnp.float32).at[:d_in, :d_out].set(w.T)
        w_t = w_t.astype(compute_dtype)
        b_p = jnp.zeros((1, d_out_p), jnp.float32).at[0, :d_out].set(b)
        prepared.append((w_t, b_p))
    return prepared, tuple(dims), dims_pad


def mlp_forward(x, prepared_params, dims, dims_pad, batch_tile=256):
    """Forward pass: one fused Pallas kernel for the whole Linear/ReLU stack."""
    B, d_in = x.shape
    assert d_in == dims[0]
    n_layers = len(prepared_params)
    compute_dtype = prepared_params[0][0].dtype
    max_pad = max(dims_pad)

    # Batch tiling: multiple of 8 (f32 sublane). A grid over batch lets v7x
    # shard tiles across its two TensorCores; at small batch grid == (1,).
    B_pad = _round_up(max(B, 1), _SUBLANE)
    if B_pad > batch_tile:
        tm = batch_tile
        B_pad = _round_up(B_pad, tm)
    else:
        tm = B_pad
    grid = (B_pad // tm,)

    # Pad input: zero rows/cols contribute exactly 0 through matmul/bias/ReLU.
    x_pad = jnp.zeros((B_pad, dims_pad[0]), x.dtype).at[:B, :d_in].set(x)

    flat_params = []
    in_specs = [pl.BlockSpec((tm, dims_pad[0]), lambda i: (i, 0))]
    for w_t, b_p in prepared_params:
        flat_params.append(w_t)
        flat_params.append(b_p)
        in_specs.append(pl.BlockSpec(w_t.shape, lambda i: (0, 0)))   # resident across grid
        in_specs.append(pl.BlockSpec(b_p.shape, lambda i: (0, 0)))

    kernel = functools.partial(
        _mlp_fused_kernel,
        n_layers=n_layers,
        dims_pad=tuple(dims_pad),
        compute_dtype=compute_dtype,
    )

    flops = int(sum(2 * B_pad * dims_pad[i] * dims_pad[i + 1] for i in range(n_layers)))
    param_bytes = sum(int(p.size) * p.dtype.itemsize for p in flat_params)
    bytes_accessed = int(int(x_pad.size) * x_pad.dtype.itemsize
                         + param_bytes
                         + B_pad * dims_pad[-1] * x.dtype.itemsize)

    # VMEM budget (v7x has only 64 MiB physical / 32 MiB scoped default).
    # 2x on tiled/resident inputs+outputs for Pallas double-buffering headroom.
    io_bytes = tm * (dims_pad[0] + dims_pad[-1]) * x.dtype.itemsize
    scratch_bytes = 2 * tm * max_pad * jnp.dtype(compute_dtype).itemsize
    resident = 2 * (param_bytes + io_bytes) + scratch_bytes
    vmem_limit = None
    if resident > (30 << 20):
        vmem_limit = min(resident + (8 << 20), 64 << 20)

    out_pad = pl.pallas_call(
        kernel,
        out_shape=jax.ShapeDtypeStruct((B_pad, dims_pad[-1]), x.dtype),
        grid=grid,
        in_specs=in_specs,
        out_specs=pl.BlockSpec((tm, dims_pad[-1]), lambda i: (i, 0)),
        scratch_shapes=[
            pltpu.VMEM((tm, max_pad), compute_dtype),
            pltpu.VMEM((tm, max_pad), compute_dtype),
        ],
        compiler_params=pltpu.CompilerParams(
            dimension_semantics=("parallel",),
            vmem_limit_bytes=vmem_limit,
        ),
        cost_estimate=pl.CostEstimate(
            flops=flops, transcendentals=0, bytes_accessed=bytes_accessed),
    )(x_pad, *flat_params)

    # Lane-dense kernel store; true (B, D_out) slice taken in plain JAX (fused under jit).
    return out_pad[:B, :dims[-1]]


if __name__ == "__main__":
    # Small shapes consistent with the module: MLP([4, 32, 32, 5]), batch=2.
    n_units = [4, 32, 32, 5]
    batch = 2

    key = jax.random.PRNGKey(0)
    key, kx = jax.random.split(key)
    x = jax.random.normal(kx, (batch, n_units[0]), jnp.float32)

    params = init_mlp_params(n_units, key)          # PyTorch (D_out, D_in) layout
    assert count_parameters(params) == sum(
        (di + 1) * do for di, do in zip(n_units[:-1], n_units[1:]))

    # Plain-JAX reference of the same math (Linear -> ReLU -> ... -> Linear).
    ref = x
    for i, (w, b) in enumerate(params):
        ref = ref @ w.T + b
        if i < len(params) - 1:
            ref = jnp.maximum(ref, 0.0)

    # f32 MXU-operand path: exactness check.
    prep32, dims, dims_pad = prepare_mlp_params(params, compute_dtype=jnp.float32)
    fwd32 = jax.jit(lambda xx: mlp_forward(xx, prep32, dims, dims_pad))
    out32 = fwd32(x)
    jax.block_until_ready(out32)
    assert out32.shape == (batch, n_units[-1])
    assert jnp.allclose(out32, ref, atol=1e-5, rtol=1e-5)

    # bf16 weight/activation path (preferred at scale on v6e/v7x): f32
    # accumulation + f32 epilogue, so only bf16 rounding error remains.
    prep16, _, _ = prepare_mlp_params(params, compute_dtype=jnp.bfloat16)
    fwd16 = jax.jit(lambda xx: mlp_forward(xx, prep16, dims, dims_pad))
    out16 = fwd16(x)
    jax.block_until_ready(out16)
    assert out16.shape == (batch, n_units[-1])
    assert jnp.allclose(out16, ref, atol=1e-1, rtol=1e-1)

    print("KERNEL_OK")
</pallas_src>

<mosaic_0001>
module attributes {stable_mosaic.version = 11 : i64} {
  func.func @_mlp_fused_kernel(%arg0: i32, %arg1: memref<8x128xf32, #tpu.memory_space<vmem>>, %arg2: memref<128x128xf32, #tpu.memory_space<vmem>>, %arg3: memref<1x128xf32, #tpu.memory_space<vmem>>, %arg4: memref<128x128xf32, #tpu.memory_space<vmem>>, %arg5: memref<1x128xf32, #tpu.memory_space<vmem>>, %arg6: memref<128x128xf32, #tpu.memory_space<vmem>>, %arg7: memref<1x128xf32, #tpu.memory_space<vmem>>, %arg8: memref<8x128xf32, #tpu.memory_space<vmem>>, %arg9: memref<8x128xf32, #tpu.memory_space<vmem>>, %arg10: memref<8x128xf32, #tpu.memory_space<vmem>>) attributes {dimension_semantics = [#tpu.dimension_semantics<parallel>], iteration_bounds = array<i64: 1>, scalar_prefetch = 0 : i64, scratch_operands = 2 : i64, tpu.core_type = #tpu.core_type<tc>, window_params = [{transform_indices = @transform_0, window_bounds = array<i64: 8, 128>}, {pipeline_mode = #tpu.pipeline_mode<synchronous>, transform_indices = @transform_1, window_bounds = array<i64: 128, 128>}, {pipeline_mode = #tpu.pipeline_mode<synchronous>, transform_indices = @transform_2, window_bounds = array<i64: 1, 128>}, {pipeline_mode = #tpu.pipeline_mode<synchronous>, transform_indices = @transform_3, window_bounds = array<i64: 128, 128>}, {pipeline_mode = #tpu.pipeline_mode<synchronous>, transform_indices = @transform_4, window_bounds = array<i64: 1, 128>}, {pipeline_mode = #tpu.pipeline_mode<synchronous>, transform_indices = @transform_5, window_bounds = array<i64: 128, 128>}, {pipeline_mode = #tpu.pipeline_mode<synchronous>, transform_indices = @transform_6, window_bounds = array<i64: 1, 128>}, {transform_indices = @transform_7, window_bounds = array<i64: 8, 128>}]} {
    %c0 = arith.constant 0 : index
    %c0_0 = arith.constant 0 : index
    %0 = vector.load %arg1[%c0, %c0_0] : memref<8x128xf32, #tpu.memory_space<vmem>>, vector<8x128xf32>
    %c0_1 = arith.constant 0 : index
    %c0_2 = arith.constant 0 : index
    %1 = vector.load %arg2[%c0_1, %c0_2] : memref<128x128xf32, #tpu.memory_space<vmem>>, vector<128x128xf32>
    %cst = arith.constant dense<0.000000e+00> : vector<8x128xf32>
    %2 = tpu.matmul %0, %1, %cst {dimension_numbers = #tpu.dot_dimension_numbers<[1], [0], [0], [1], [0, 0, 1, 1], [], []>} : vector<8x128xf32>, vector<128x128xf32>, vector<8x128xf32> -> vector<8x128xf32>
    %c0_3 = arith.constant 0 : index
    %c0_4 = arith.constant 0 : index
    %3 = vector.load %arg3[%c0_3, %c0_4] : memref<1x128xf32, #tpu.memory_space<vmem>>, vector<1x128xf32>
    %4 = vector.broadcast %3 : vector<1x128xf32> to vector<8x128xf32>
    %5 = arith.addf %2, %4 : vector<8x128xf32>
    %cst_5 = arith.constant 0.000000e+00 : f32
    %6 = vector.broadcast %cst_5 : f32 to vector<8x128xf32>
    %7 = arith.maximumf %5, %6 : vector<8x128xf32>
    %c0_6 = arith.constant 0 : index
    %c0_7 = arith.constant 0 : index
    %8 = vector.load %arg9[%c0_6, %c0_7] : memref<8x128xf32, #tpu.memory_space<vmem>>, vector<8x128xf32>
    tpu.vector_store %arg9[%c0_6, %c0_7], %7 {strides = array<i32>} : memref<8x128xf32, #tpu.memory_space<vmem>>, vector<8x128xf32>,
    %c0_8 = arith.constant 0 : index
    %c0_9 = arith.constant 0 : index
    %9 = vector.load %arg9[%c0_8, %c0_9] : memref<8x128xf32, #tpu.memory_space<vmem>>, vector<8x128xf32>
    %c0_10 = arith.constant 0 : index
    %c0_11 = arith.constant 0 : index
    %10 = vector.load %arg4[%c0_10, %c0_11] : memref<128x128xf32, #tpu.memory_space<vmem>>, vector<128x128xf32>
    %cst_12 = arith.constant dense<0.000000e+00> : vector<8x128xf32>
    %11 = tpu.matmul %9, %10, %cst_12 {dimension_numbers = #tpu.dot_dimension_numbers<[1], [0], [0], [1], [0, 0, 1, 1], [], []>} : vector<8x128xf32>, vector<128x128xf32>, vector<8x128xf32> -> vector<8x128xf32>
    %c0_13 = arith.constant 0 : index
    %c0_14 = arith.constant 0 : index
    %12 = vector.load %arg5[%c0_13, %c0_14] : memref<1x128xf32, #tpu.memory_space<vmem>>, vector<1x128xf32>
    %13 = vector.broadcast %12 : vector<1x128xf32> to vector<8x128xf32>
    %14 = arith.addf %11, %13 : vector<8x128xf32>
    %cst_15 = arith.constant 0.000000e+00 : f32
    %15 = vector.broadcast %cst_15 : f32 to vector<8x128xf32>
    %16 = arith.maximumf %14, %15 : vector<8x128xf32>
    %c0_16 = arith.constant 0 : index
    %c0_17 = arith.constant 0 : index
    %17 = vector.load %arg10[%c0_16, %c0_17] : memref<8x128xf32, #tpu.memory_space<vmem>>, vector<8x128xf32>
    tpu.vector_store %arg10[%c0_16, %c0_17], %16 {strides = array<i32>} : memref<8x128xf32, #tpu.memory_space<vmem>>, vector<8x128xf32>,
    %c0_18 = arith.constant 0 : index
    %c0_19 = arith.constant 0 : index
    %18 = vector.load %arg10[%c0_18, %c0_19] : memref<8x128xf32, #tpu.memory_space<vmem>>, vector<8x128xf32>
    %c0_20 = arith.constant 0 : index
    %c0_21 = arith.constant 0 : index
    %19 = vector.load %arg6[%c0_20, %c0_21] : memref<128x128xf32, #tpu.memory_space<vmem>>, vector<128x128xf32>
    %cst_22 = arith.constant dense<0.000000e+00> : vector<8x128xf32>
    %20 = tpu.matmul %18, %19, %cst_22 {dimension_numbers = #tpu.dot_dimension_numbers<[1], [0], [0], [1], [0, 0, 1, 1], [], []>} : vector<8x128xf32>, vector<128x128xf32>, vector<8x128xf32> -> vector<8x128xf32>
    %c0_23 = arith.constant 0 : index
    %c0_24 = arith.constant 0 : index
    %21 = vector.load %arg7[%c0_23, %c0_24] : memref<1x128xf32, #tpu.memory_space<vmem>>, vector<1x128xf32>
    %22 = vector.broadcast %21 : vector<1x128xf32> to vector<8x128xf32>
    %23 = arith.addf %20, %22 : vector<8x128xf32>
    %c0_25 = arith.constant 0 : index
    %c0_26 = arith.constant 0 : index
    %24 = vector.load %arg8[%c0_25, %c0_26] : memref<8x128xf32, #tpu.memory_space<vmem>>, vector<8x128xf32>
    tpu.vector_store %arg8[%c0_25, %c0_26], %23 {strides = array<i32>} : memref<8x128xf32, #tpu.memory_space<vmem>>, vector<8x128xf32>,
    return
  }
  func.func @transform_0(%arg0: i32) -> (i32, i32) {
    %c0_i32 = arith.constant 0 : i32
    %c0_i32_0 = arith.constant 0 : i32
    return %arg0, %c0_i32 : i32, i32
  }
  func.func @transform_1(%arg0: i32) -> (i32, i32) {
    %c0_i32 = arith.constant 0 : i32
    %c0_i32_0 = arith.constant 0 : i32
    %c0_i32_1 = arith.constant 0 : i32
    return %c0_i32, %c0_i32_0 : i32, i32
  }
  func.func @transform_2(%arg0: i32) -> (i32, i32) {
    %c0_i32 = arith.constant 0 : i32
    %c0_i32_0 = arith.constant 0 : i32
    %c0_i32_1 = arith.constant 0 : i32
    return %c0_i32, %c0_i32_0 : i32, i32
  }
  func.func @transform_3(%arg0: i32) -> (i32, i32) {
    %c0_i32 = arith.constant 0 : i32
    %c0_i32_0 = arith.constant 0 : i32
    %c0_i32_1 = arith.constant 0 : i32
    return %c0_i32, %c0_i32_0 : i32, i32
  }
  func.func @transform_4(%arg0: i32) -> (i32, i32) {
    %c0_i32 = arith.constant 0 : i32
    %c0_i32_0 = arith.constant 0 : i32
    %c0_i32_1 = arith.constant 0 : i32
    return %c0_i32, %c0_i32_0 : i32, i32
  }
  func.func @transform_5(%arg0: i32) -> (i32, i32) {
    %c0_i32 = arith.constant 0 : i32
    %c0_i32_0 = arith.constant 0 : i32
    %c0_i32_1 = arith.constant 0 : i32
    return %c0_i32, %c0_i32_0 : i32, i32
  }
  func.func @transform_6(%arg0: i32) -> (i32, i32) {
    %c0_i32 = arith.constant 0 : i32
    %c0_i32_0 = arith.constant 0 : i32
    %c0_i32_1 = arith.constant 0 : i32
    return %c0_i32, %c0_i32_0 : i32, i32
  }
  func.func @transform_7(%arg0: i32) -> (i32, i32) {
    %c0_i32 = arith.constant 0 : i32
    %c0_i32_0 = arith.constant 0 : i32
    return %arg0, %c0_i32 : i32, i32
  }
}

</mosaic_0001>

<llo_original>
// kernel: _lambda_.1
$region0: #{_lambda_.1}
  #allocation0 [shape = 'u32[]', space=smem, size = 0x4, offset = 0x4, fixed_abs, tag = 'smem constant byte address 0x4 - core index']
  #allocation1 [shape = 'u32[72,128]{1,0:T(1,128)}', space=vmem, size = 0x9000, scoped, tag = 'internal scratch']
  #allocation2 [shape = 'f32[8,128]{1,0:T(8,128)}', space=vmem, size = 0x1000, scoped, tag = 'scratch operand']
  #allocation3 [shape = 'f32[8,128]{1,0:T(8,128)}', space=vmem, size = 0x1000, scoped, tag = 'scratch operand']
  %s0 = inlined_call_operand.vmem [shape: f32[8,128], index: 0, kind: input, shape index: {}]
  %s1 = inlined_call_operand.hbm [shape: f32[128,128], index: 1, kind: input, shape index: {}]
  %s2 = inlined_call_operand.vmem [shape: f32[1,128], index: 2, kind: input, shape index: {}]
  %s3 = inlined_call_operand.hbm [shape: f32[128,128], index: 3, kind: input, shape index: {}]
  %s4 = inlined_call_operand.vmem [shape: f32[1,128], index: 4, kind: input, shape index: {}]
  %s5 = inlined_call_operand.hbm [shape: f32[128,128], index: 5, kind: input, shape index: {}]
  %s6 = inlined_call_operand.vmem [shape: f32[1,128], index: 6, kind: input, shape index: {}]
  %s7 = inlined_call_operand.vmem [shape: f32[8,128], index: 7, kind: output, shape index: {}]
  %s8 = sld [smem:[#allocation0]]
  $region50: #{_lambda_.1} parent=0
    _
  %s10 = ssub.s32 1, %s8
  %s11 = scalar_select 0, %s10, %s8
  $region1: #{_lambda_.1} parent=0
    #allocation4 [shape = 'u8[65536]{0}', space=vmem, size = 0x10000, scoped, tag = 'input window, operand 1, single buffered']
    #allocation5 [shape = 's32[1]{0}', space=sflag, size = 0x4, scoped, tag = 'scoped memory for _lambda_.1']
    #allocation6 [shape = 'u8[65536]{0}', space=vmem, size = 0x10000, scoped, tag = 'input window, operand 3, single buffered']
    #allocation7 [shape = 's32[1]{0}', space=sflag, size = 0x4, scoped, tag = 'scoped memory for _lambda_.1']
    #allocation8 [shape = 'u8[65536]{0}', space=vmem, size = 0x10000, scoped, tag = 'input window, operand 5, single buffered']
    %12 = vsyncpa [#allocation5], 0
    %13 = vsyncpa [#allocation7], 0
    // Predicated region
    $region2: #{_lambda_.1} parent=1 // pred_check
      _
    $region3: #{_lambda_.1} parent=1 // pred_check_branch
      %15 = sbr.rel (0) target = $region5
    $region4: #{_lambda_.1} parent=1 // pred_region
      _
    $region5: #{_lambda_.1} parent=1 // pred_fallthru
      _
    // Predicated region
    $region6: #{_lambda_.1} parent=1 // pred_check
      _
    $region7: #{_lambda_.1} parent=1 // pred_check_branch
      %17 = sbr.rel (0) target = $region9
    $region8: #{_lambda_.1} parent=1 // pred_region
      %19 = vsyncadd [#allocation5], 0
      %s20 = sshll.u32 %s1, 4
      %s21 = int_to_ptr.hbm [resolvable:$true] %s20
      %s22 = sshll.u32 [#allocation4], 4
      %s23 = int_to_ptr.vmem [resolvable:$true] %s22
      %28 = dma.hbm_to_vmem [thread:$0]  %s21, 2048, %s23, [#allocation5], 128, 128, 8
    $region9: #{_lambda_.1} parent=1 // pred_fallthru
      _
    // Predicated region
    $region10: #{_lambda_.1} parent=1 // pred_check
      _
    $region11: #{_lambda_.1} parent=1 // pred_check_branch
      %30 = sbr.rel (0) target = $region13
    $region12: #{_lambda_.1} parent=1 // pred_region
      _
    $region13: #{_lambda_.1} parent=1 // pred_fallthru
      _
    // Predicated region
    $region14: #{_lambda_.1} parent=1 // pred_check
      _
    $region15: #{_lambda_.1} parent=1 // pred_check_branch
      %32 = sbr.rel (0) target = $region17
    $region16: #{_lambda_.1} parent=1 // pred_region
      %34 = vsyncadd [#allocation7], 0
      %s35 = sshll.u32 %s3, 4
      %s36 = int_to_ptr.hbm [resolvable:$true] %s35
      %s37 = sshll.u32 [#allocation6], 4
      %s38 = int_to_ptr.vmem [resolvable:$true] %s37
      %43 = dma.hbm_to_vmem [thread:$0]  %s36, 2048, %s38, [#allocation7], 128, 128, 8
    $region17: #{_lambda_.1} parent=1 // pred_fallthru
      _
    // Predicated region
    $region18: #{_lambda_.1} parent=1 // pred_check
      _
    $region19: #{_lambda_.1} parent=1 // pred_check_branch
      %45 = sbr.rel (0) target = $region21
    $region20: #{_lambda_.1} parent=1 // pred_region
      _
    $region21: #{_lambda_.1} parent=1 // pred_fallthru
      _
    // Predicated region
    $region22: #{_lambda_.1} parent=1 // pred_check
      _
    $region23: #{_lambda_.1} parent=1 // pred_check_branch
      %47 = sbr.rel (0) target = $region25
    $region24: #{_lambda_.1} parent=1 // pred_region
      %49 = vsyncadd [#allocation7], 0
      %s50 = sshll.u32 %s5, 4
      %s51 = int_to_ptr.hbm [resolvable:$true] %s50
      %s52 = sshll.u32 [#allocation8], 4
      %s53 = int_to_ptr.vmem [resolvable:$true] %s52
      %58 = dma.hbm_to_vmem [thread:$0]  %s51, 2048, %s53, [#allocation7], 128, 128, 8
    $region25: #{_lambda_.1} parent=1 // pred_fallthru
      _
    // Predicated region
    $region26: #{_lambda_.1} parent=1 // pred_check
      _
    $region27: #{_lambda_.1} parent=1 // pred_check_branch
      %60 = sbr.rel (0) target = $region29
    $region28: #{_lambda_.1} parent=1 // pred_region
      _
    $region29: #{_lambda_.1} parent=1 // pred_fallthru
      _
    // Predicated region
    $region30: #{_lambda_.1} parent=1 // pred_check
      _
    $region31: #{_lambda_.1} parent=1 // pred_check_branch
      %62 = sbr.rel (0) target = $region33
    $region32: #{_lambda_.1} parent=1 // pred_region
      %64 = dma.done [#allocation5], 2048
    $region33: #{_lambda_.1} parent=1 // pred_fallthru
      _
    // Predicated region
    $region34: #{_lambda_.1} parent=1 // pred_check
      _
    $region35: #{_lambda_.1} parent=1 // pred_check_branch
      %66 = sbr.rel (0) target = $region37
    $region36: #{_lambda_.1} parent=1 // pred_region
      %68 = dma.done [#allocation7], 2048
    $region37: #{_lambda_.1} parent=1 // pred_fallthru
      _
    // Predicated region
    $region38: #{_lambda_.1} parent=1 // pred_check
      _
    $region39: #{_lambda_.1} parent=1 // pred_check_branch
      %70 = sbr.rel (0) target = $region41
    $region40: #{_lambda_.1} parent=1 // pred_region
      %72 = dma.done [#allocation7], 2048
    $region41: #{_lambda_.1} parent=1 // pred_fallthru
      _
    %v73 = vld [vmem:[%s0] sm:$0xff]
    %v74 = vld [vmem:[#allocation4] sm:$0xff]
    %v75 = vld [vmem:[#allocation4 + $0x8] sm:$0xff]
    %v76 = vld [vmem:[#allocation4 + $0x10] sm:$0xff]
    %v77 = vld [vmem:[#allocation4 + $0x18] sm:$0xff]
    %v78 = vld [vmem:[#allocation4 + $0x20] sm:$0xff]
    %v79 = vld [vmem:[#allocation4 + $0x28] sm:$0xff]
    %v80 = vld [vmem:[#allocation4 + $0x30] sm:$0xff]
    %v81 = vld [vmem:[#allocation4 + $0x38] sm:$0xff]
    %v82 = vld [vmem:[#allocation4 + $0x40] sm:$0xff]
    %v83 = vld [vmem:[#allocation4 + $0x48] sm:$0xff]
    %v84 = vld [vmem:[#allocation4 + $0x50] sm:$0xff]
    %v85 = vld [vmem:[#allocation4 + $0x58] sm:$0xff]
    %v86 = vld [vmem:[#allocation4 + $0x60] sm:$0xff]
    %v87 = vld [vmem:[#allocation4 + $0x68] sm:$0xff]
    %v88 = vld [vmem:[#allocation4 + $0x70] sm:$0xff]
    %v89 = vld [vmem:[#allocation4 + $0x78] sm:$0xff]
    %v90 = vld [vmem:[%s2] sm:$0x1]
    %v92 = vperm.slane %v90, 0
    %94 = vmatpush.msra.mxu0 %v89
    %95 = vmatpush.msra.mxu0 %v88
    %96 = vmatpush.msra.mxu0 %v87
    %97 = vmatpush.msra.mxu0 %v86
    %98 = vmatpush.msra.mxu0 %v85
    %99 = vmatpush.msra.mxu0 %v84
    %100 = vmatpush.msra.mxu0 %v83
    %101 = vmatpush.msra.mxu0 %v82
    %102 = vmatpush.msra.mxu0 %v81
    %103 = vmatpush.msra.mxu0 %v80
    %104 = vmatpush.msra.mxu0 %v79
    %105 = vmatpush.msra.mxu0 %v78
    %106 = vmatpush.msra.mxu0 %v77
    %107 = vmatpush.msra.mxu0 %v76
    %108 = vmatpush.msra.mxu0 %v75
    %109 = vmatpush.msra.mxu0 %v74
    %110 = vmatmul.f32.gmra.mxu0 %v73
    %v111 = vpop.f32.mrf.mxu0
    %v112 = vadd.f32 %v92, %v111
    %113 = vdwg.mxu0
    %v114 = vmax.f32 %v112, 0.0
    %115 = vst [vmem:[#allocation2] sm:$0xff] %v114
    %v116 = vld [vmem:[#allocation2] sm:$0xff]
    %v117 = vld [vmem:[#allocation6] sm:$0xff]
    %v118 = vld [vmem:[#allocation6 + $0x8] sm:$0xff]
    %v119 = vld [vmem:[#allocation6 + $0x10] sm:$0xff]
    %v120 = vld [vmem:[#allocation6 + $0x18] sm:$0xff]
    %v121 = vld [vmem:[#allocation6 + $0x20] sm:$0xff]
    %v122 = vld [vmem:[#allocation6 + $0x28] sm:$0xff]
    %v123 = vld [vmem:[#allocation6 + $0x30] sm:$0xff]
    %v124 = vld [vmem:[#allocation6 + $0x38] sm:$0xff]
    %v125 = vld [vmem:[#allocation6 + $0x40] sm:$0xff]
    %v126 = vld [vmem:[#allocation6 + $0x48] sm:$0xff]
    %v127 = vld [vmem:[#allocation6 + $0x50] sm:$0xff]
    %v128 = vld [vmem:[#allocation6 + $0x58] sm:$0xff]
    %v129 = vld [vmem:[#allocation6 + $0x60] sm:$0xff]
    %v130 = vld [vmem:[#allocation6 + $0x68] sm:$0xff]
    %v131 = vld [vmem:[#allocation6 + $0x70] sm:$0xff]
    %v132 = vld [vmem:[#allocation6 + $0x78] sm:$0xff]
    %v133 = vld [vmem:[%s4] sm:$0x1]
    %v135 = vperm.slane %v133, 0
    %137 = vmatpush.msra.mxu0 %v132
    %138 = vmatpush.msra.mxu0 %v131
    %139 = vmatpush.msra.mxu0 %v130
    %140 = vmatpush.msra.mxu0 %v129
    %141 = vmatpush.msra.mxu0 %v128
    %142 = vmatpush.msra.mxu0 %v127
    %143 = vmatpush.msra.mxu0 %v126
    %144 = vmatpush.msra.mxu0 %v125
    %145 = vmatpush.msra.mxu0 %v124
    %146 = vmatpush.msra.mxu0 %v123
    %147 = vmatpush.msra.mxu0 %v122
    %148 = vmatpush.msra.mxu0 %v121
    %149 = vmatpush.msra.mxu0 %v120
    %150 = vmatpush.msra.mxu0 %v119
    %151 = vmatpush.msra.mxu0 %v118
    %152 = vmatpush.msra.mxu0 %v117
    %153 = vmatmul.f32.gmra.mxu0 %v116
    %v154 = vpop.f32.mrf.mxu0
    %v155 = vadd.f32 %v135, %v154
    %156 = vdwg.mxu0
    %v157 = vmax.f32 %v155, 0.0
    %158 = vst [vmem:[#allocation3] sm:$0xff] %v157
    %v159 = vld [vmem:[#allocation3] sm:$0xff]
    %v160 = vld [vmem:[#allocation8] sm:$0xff]
    %v161 = vld [vmem:[#allocation8 + $0x8] sm:$0xff]
    %v162 = vld [vmem:[#allocation8 + $0x10] sm:$0xff]
    %v163 = vld [vmem:[#allocation8 + $0x18] sm:$0xff]
    %v164 = vld [vmem:[#allocation8 + $0x20] sm:$0xff]
    %v165 = vld [vmem:[#allocation8 + $0x28] sm:$0xff]
    %v166 = vld [vmem:[#allocation8 + $0x30] sm:$0xff]
    %v167 = vld [vmem:[#allocation8 + $0x38] sm:$0xff]
    %v168 = vld [vmem:[#allocation8 + $0x40] sm:$0xff]
    %v169 = vld [vmem:[#allocation8 + $0x48] sm:$0xff]
    %v170 = vld [vmem:[#allocation8 + $0x50] sm:$0xff]
    %v171 = vld [vmem:[#allocation8 + $0x58] sm:$0xff]
    %v172 = vld [vmem:[#allocation8 + $0x60] sm:$0xff]
    %v173 = vld [vmem:[#allocation8 + $0x68] sm:$0xff]
    %v174 = vld [vmem:[#allocation8 + $0x70] sm:$0xff]
    %v175 = vld [vmem:[#allocation8 + $0x78] sm:$0xff]
    %v176 = vld [vmem:[%s6] sm:$0x1]
    %v178 = vperm.slane %v176, 0
    %180 = vmatpush.msra.mxu0 %v175
    %181 = vmatpush.msra.mxu0 %v174
    %182 = vmatpush.msra.mxu0 %v173
    %183 = vmatpush.msra.mxu0 %v172
    %184 = vmatpush.msra.mxu0 %v171
    %185 = vmatpush.msra.mxu0 %v170
    %186 = vmatpush.msra.mxu0 %v169
    %187 = vmatpush.msra.mxu0 %v168
    %188 = vmatpush.msra.mxu0 %v167
    %189 = vmatpush.msra.mxu0 %v166
    %190 = vmatpush.msra.mxu0 %v165
    %191 = vmatpush.msra.mxu0 %v164
    %192 = vmatpush.msra.mxu0 %v163
    %193 = vmatpush.msra.mxu0 %v162
    %194 = vmatpush.msra.mxu0 %v161
    %195 = vmatpush.msra.mxu0 %v160
    %196 = vmatmul.f32.gmra.mxu0 %v159
    %v197 = vpop.f32.mrf.mxu0
    %v198 = vadd.f32 %v178, %v197
    %199 = vdwg.mxu0
    %200 = vst [vmem:[%s7] sm:$0xff] %v198
    // Predicated region
    $region42: #{_lambda_.1} parent=1 // pred_check
      _
    $region43: #{_lambda_.1} parent=1 // pred_check_branch
      %202 = sbr.rel (0) target = $region45
    $region44: #{_lambda_.1} parent=1 // pred_region
      _
    $region45: #{_lambda_.1} parent=1 // pred_fallthru
      _
    // Predicated region
    $region46: #{_lambda_.1} parent=1 // pred_check
      _
    $region47: #{_lambda_.1} parent=1 // pred_check_branch
      %204 = sbr.rel (0) target = $region49
    $region48: #{_lambda_.1} parent=1 // pred_region
      _
    $region49: #{_lambda_.1} parent=1 // pred_fallthru
      _
    %205 = vsyncpa [#allocation5], 1
    %206 = vsyncpa [#allocation7], 1

</llo_original>
